<compile_context>
chip_gen: v7x
topology: tpu7x:2x2x1
jax: 0.10.0
libtpu: 0.0.40
codegen_flags: <defaults>
</compile_context>

<pallas_src>
import functools

import jax
import jax.numpy as jnp
from jax import lax
from jax.experimental import pallas as pl
from jax.experimental.pallas import tpu as pltpu

LANE = 128  # pad v_num up to one full lane vector


def _uncertainty_loss_kernel(x_ref, out_ref, *, v_num):
    # x_ref: (2, LANE) f32 in VMEM. Row 0 = per-task losses, row 1 = s.
    l = x_ref[0:1, :]          # (1, LANE)
    s = x_ref[1:2, :]          # (1, LANE)

    # coef folds to a compile-time constant vector:
    #   0.5 for i < 2, 1.0 for 2 <= i < v_num, 0.0 for padded lanes.
    idx = lax.broadcasted_iota(jnp.int32, (1, LANE), 1)
    coef = (jnp.where(idx < 2, jnp.float32(0.5), jnp.float32(1.0))
            * (idx < v_num).astype(jnp.float32))

    # Padded lanes: coef == 0 kills the exp(-s)*l term; s padding is 0 so
    # 0.5*s contributes 0 there too — no explicit mask multiply needed.
    per_task = coef * jnp.exp(-s) * l + jnp.float32(0.5) * s
    out_ref[0, 0] = jnp.sum(per_task)


def uncertainty_loss(losses, s):
    """losses: (v_num,) f32 per-task scalar losses; s: (v_num,) f32 parameter."""
    v_num = losses.shape[0]
    assert s.shape == (v_num,)
    assert v_num <= LANE

    # Single stack + single zero-pad -> one lane-dense (2, LANE) operand.
    x = jnp.pad(
        jnp.stack([losses.astype(jnp.float32), s.astype(jnp.float32)], axis=0),
        ((0, 0), (0, LANE - v_num)),
    )

    out = pl.pallas_call(
        functools.partial(_uncertainty_loss_kernel, v_num=v_num),
        out_shape=jax.ShapeDtypeStruct((1, 1), jnp.float32),
        in_specs=[pl.BlockSpec(memory_space=pltpu.VMEM)],
        out_specs=pl.BlockSpec(memory_space=pltpu.SMEM),
        cost_estimate=pl.CostEstimate(
            flops=4 * LANE,
            transcendentals=LANE,
            bytes_accessed=2 * LANE * 4 + 4,
        ),
    )(x)
    return out[0, 0]


def uncertainty_loss_ref(losses, s):
    """Pure-JAX reference mirroring the PyTorch forward."""
    v_num = losses.shape[0]
    total = jnp.float32(0.0)
    for i in range(v_num):
        if i < 2:
            total = total + 0.5 * jnp.exp(-s[i]) * losses[i] + 0.5 * s[i]
        else:
            total = total + jnp.exp(-s[i]) * losses[i] + 0.5 * s[i]
    return total


if __name__ == "__main__":
    v_num = 3
    # Deterministic parameter init, exactly as in the module's __init__.
    s = jnp.ones((v_num,), dtype=jnp.float32) * 0.1

    # Deterministic example per-task scalar losses.
    key = jax.random.PRNGKey(0)
    losses = jax.random.uniform(key, (v_num,), dtype=jnp.float32) * 2.0

    out = jax.block_until_ready(uncertainty_loss(losses, s))
    ref = uncertainty_loss_ref(losses, s)

    # Mirror the module's `print(self.s)` side effect (host-side, not in-kernel).
    print("s =", s)

    assert jnp.allclose(out, ref, rtol=1e-5, atol=1e-5), (out, ref)
    print("KERNEL_OK")
</pallas_src>

<mosaic_0001>
module attributes {stable_mosaic.version = 11 : i64} {
  func.func @_uncertainty_loss_kernel(%arg0: memref<2x128xf32, #tpu.memory_space<vmem>>, %arg1: memref<1x1xf32, #tpu.memory_space<smem>>) attributes {dimension_semantics = [], scalar_prefetch = 0 : i64, scratch_operands = 0 : i64, tpu.core_type = #tpu.core_type<tc>} {
    %c0 = arith.constant 0 : index
    %c0_0 = arith.constant 0 : index
    %0 = vector.load %arg0[%c0, %c0_0] : memref<2x128xf32, #tpu.memory_space<vmem>>, vector<1x128xf32>
    %c1 = arith.constant 1 : index
    %c0_1 = arith.constant 0 : index
    %1 = vector.load %arg0[%c1, %c0_1] : memref<2x128xf32, #tpu.memory_space<vmem>>, vector<1x128xf32>
    %2 = tpu.iota {dimensions = array<i32: 1>} : vector<1x128xi32>
    %c2_i32 = arith.constant 2 : i32
    %3 = vector.broadcast %c2_i32 : i32 to vector<1x128xi32>
    %4 = arith.cmpi slt, %2, %3 : vector<1x128xi32>
    %cst = arith.constant 5.000000e-01 : f32
    %cst_2 = arith.constant 1.000000e+00 : f32
    %5 = vector.broadcast %cst : f32 to vector<1x128xf32>
    %6 = vector.broadcast %cst_2 : f32 to vector<1x128xf32>
    %7 = arith.select %4, %5, %6 : vector<1x128xi1>, vector<1x128xf32>
    %c3_i32 = arith.constant 3 : i32
    %8 = vector.broadcast %c3_i32 : i32 to vector<1x128xi32>
    %9 = arith.cmpi slt, %2, %8 : vector<1x128xi32>
    %10 = arith.extui %9 : vector<1x128xi1> to vector<1x128xi32>
    %11 = arith.sitofp %10 : vector<1x128xi32> to vector<1x128xf32>
    %12 = arith.mulf %7, %11 : vector<1x128xf32>
    %cst_3 = arith.constant 0.000000e+00 : f32
    %13 = vector.broadcast %cst_3 : f32 to vector<1x128xf32>
    %14 = arith.subf %13, %1 : vector<1x128xf32>
    %15 = math.exp %14 : vector<1x128xf32>
    %16 = arith.mulf %12, %15 : vector<1x128xf32>
    %17 = arith.mulf %16, %0 : vector<1x128xf32>
    %cst_4 = arith.constant 5.000000e-01 : f32
    %18 = vector.broadcast %cst_4 : f32 to vector<1x128xf32>
    %19 = arith.mulf %18, %1 : vector<1x128xf32>
    %20 = arith.addf %17, %19 : vector<1x128xf32>
    %21 = vector.shape_cast %20 : vector<1x128xf32> to vector<1x1x128xf32>
    %cst_5 = arith.constant dense<0.000000e+00> : vector<1xf32>
    %22 = vector.multi_reduction <add>, %21, %cst_5 [1, 2] : vector<1x1x128xf32> to vector<1xf32>
    %23 = vector.shape_cast %22 : vector<1xf32> to vector<1x1x1xf32>
    %24 = vector.extract %23[0, 0, 0] : f32 from vector<1x1x1xf32>
    %c0_6 = arith.constant 0 : index
    %c0_7 = arith.constant 0 : index
    %25 = memref.load %arg1[%c0_6, %c0_7] : memref<1x1xf32, #tpu.memory_space<smem>>
    memref.store %24, %arg1[%c0_6, %c0_7] : memref<1x1xf32, #tpu.memory_space<smem>>
    return
  }
}

</mosaic_0001>

<llo_original>
// kernel: tpu_custom_call.1
$region0: #{tpu_custom_call.1}
  #allocation0 [shape = 'u32[]', space=smem, size = 0x4, offset = 0x4, fixed_abs, tag = 'smem constant byte address 0x4 - core index']
  #allocation1 [shape = 'u32[144,128]{1,0:T(1,128)}', space=vmem, size = 0x12000, scoped, tag = 'internal scratch']
  %s0 = inlined_call_operand.hbm [shape: f32[2,128], index: 0, kind: input, shape index: {}]
  %s1 = inlined_call_operand.hbm [shape: f32[1,1], index: 1, kind: output, shape index: {}]
  %s2 = sld [smem:[#allocation0]]
  $region18: #{tpu_custom_call.1} parent=0
    _
  %s4 = ssub.s32 1, %s2
  %s5 = scalar_select 0, %s4, %s2
  $region1: #{tpu_custom_call.1} parent=0
    #allocation2 [shape = 'u8[1024]{0}', space=vmem, size = 0x400, scoped, tag = 'input window, operand 0, single buffered']
    #allocation3 [shape = 's32[1]{0}', space=sflag, size = 0x4, scoped, tag = 'scoped memory for tpu_custom_call.1']
    #allocation4 [shape = 's32[1]{0}', space=sflag, size = 0x4, scoped, tag = 'scoped memory for tpu_custom_call.1']
    #allocation5 [shape = 'u8[512]{0}', space=smem, size = 0x200, scoped, tag = 'output window, operand 0, single buffered']
    %6 = vsyncpa [#allocation3], 0
    %7 = vsyncpa [#allocation4], 0
    // Predicated region
    $region2: #{tpu_custom_call.1} parent=1 // pred_check
      _
    $region3: #{tpu_custom_call.1} parent=1 // pred_check_branch
      %9 = sbr.rel (0) target = $region5
    $region4: #{tpu_custom_call.1} parent=1 // pred_region
      %s11 = ssub.s32 32, 32
      %12 = vsyncadd [#allocation3], %s11
      %s14 = sshll.u32 [#allocation2], 4
      %s15 = int_to_ptr.vmem [resolvable:$true] %s14
      %17 = dma.hbm_to_vmem [thread:$0]  %s0, 32, %s15, [#allocation3]
    $region5: #{tpu_custom_call.1} parent=1 // pred_fallthru
      _
    // Predicated region
    $region6: #{tpu_custom_call.1} parent=1 // pred_check
      _
    $region7: #{tpu_custom_call.1} parent=1 // pred_check_branch
      %19 = sbr.rel (0) target = $region9
    $region8: #{tpu_custom_call.1} parent=1 // pred_region
      %20 = dma.done [#allocation3], 32
    $region9: #{tpu_custom_call.1} parent=1 // pred_fallthru
      _
    %v21 = vld [vmem:[#allocation2] sm:$0x1]
    %v22 = vld [vmem:[#allocation2 + $0x1] sm:$0x1]
    %v23 = vlaneseq
    %v24 = vand.u32 %v23, 127
    %vm25 = vcmp.lt.s32.totalorder %v24, 2
    %v26 = vsel %vm25, 0.5, 1.0
    %vm27 = vcmp.lt.s32.totalorder %v24, 3
    %v28 = vsel %vm27, 1, 0
    %v29 = vcvt.s32.f32 %v28
    %v30 = vmul.f32 %v26, %v29
    %v31 = vsub.f32 0.0, %v22
    %v32 = vmul.f32 %v31, 1.442695
    %v33 = vpow.pop %v32
    %v34 = vmul.f32 %v30, %v33
    %v35 = vmul.f32 %v34, %v21
    %v36 = vmul.f32 %v22, 0.5
    %v37 = vadd.f32 %v35, %v36
    %vm38 = vcmask 1040384
    %v39 = vsel %vm38, %v37, 0.0
    %40 = vadd.xlane.f32.xlu0 %v39
    %v41 = vpop.xlane.xlu0 %40
    %v42 = vrot.slane %v41, 4
    %v43 = vadd.f32 %v41, %v42
    %v44 = vrot.slane %v43, 2
    %v45 = vadd.f32 %v43, %v44
    %v46 = vrot.slane %v45, 1
    %v47 = vadd.f32 %v45, %v46
    %s48 = vtos %v47
    %s49 = scalar_lea.smem [#allocation5], 0
    %50 = sst [smem:[%s49]] %s48
    // Predicated region
    $region10: #{tpu_custom_call.1} parent=1 // pred_check
      _
    $region11: #{tpu_custom_call.1} parent=1 // pred_check_branch
      %52 = sbr.rel (0) target = $region13
    $region12: #{tpu_custom_call.1} parent=1 // pred_region
      %s54 = ssub.s32 16, 16
      %55 = vsyncadd [#allocation4], %s54
      %58 = dma.smem_to_hbm [#allocation5], 16, %s1, [#allocation4]
    $region13: #{tpu_custom_call.1} parent=1 // pred_fallthru
      _
    // Predicated region
    $region14: #{tpu_custom_call.1} parent=1 // pred_check
      _
    $region15: #{tpu_custom_call.1} parent=1 // pred_check_branch
      %60 = sbr.rel (0) target = $region17
    $region16: #{tpu_custom_call.1} parent=1 // pred_region
      %61 = dma.done [#allocation4], 16
    $region17: #{tpu_custom_call.1} parent=1 // pred_fallthru
      _
    %62 = sfence
    %63 = vsyncpa [#allocation3], 1
    %64 = vsyncpa [#allocation4], 1

</llo_original>
